<compile_context>
chip_gen: v6e
topology: v6e:2x2x1
jax: 0.10.0
libtpu: 0.0.40
codegen_flags: <defaults>
</compile_context>

<pallas_src>
import jax
import jax.numpy as jnp
from jax.experimental import pallas as pl
from jax.experimental.pallas import tpu as pltpu


def _tagger_linear_kernel(w_ref, b_ref, x_ref, o_ref):
    # w_ref: (num_tags, feat)   b_ref: (num_tags, 1)
    # x_ref: (1, feat, TILE_L)  o_ref: (1, num_tags, TILE_L)
    acc = jnp.dot(w_ref[...], x_ref[0],
                  preferred_element_type=jnp.float32)       # MXU, f32 accumulate
    o_ref[0] = (acc + b_ref[...]).astype(o_ref.dtype)        # lane-dense store


def tagger_forward(x_ncl, weight, bias, *, tile_l=1024):
    """Tagging head of Tagger.forward.

    x_ncl : (batch, feat, length)  channels-first activations (CNN output)
    weight: (num_tags, feat)       nn.Linear weight layout
    bias  : (num_tags,)
    returns logit: (batch, length, num_tags) float32
    """
    batch, feat, length = x_ncl.shape
    num_tags, feat_w = weight.shape
    assert feat == feat_w, "feature dim must match nn.Linear(in_features, num_tags)"

    lane = 128
    # Tile along length: multiple of 128, clamped to the (rounded-up) length.
    l_rounded = ((length + lane - 1) // lane) * lane
    tile_l = max(lane, (min(tile_l, l_rounded) // lane) * lane)
    l_pad = pl.cdiv(length, tile_l) * tile_l

    x_in = x_ncl
    if l_pad != length:
        # Cheap zero-pad so every block is full-size / unmasked (sliced off below).
        x_in = jnp.pad(x_ncl, ((0, 0), (0, 0), (0, l_pad - length)))

    w = weight.astype(x_in.dtype)                     # same dtype as activations (bf16 OK)
    b2d = bias.astype(jnp.float32).reshape(num_tags, 1)

    grid = (batch, l_pad // tile_l)

    out_ncl = pl.pallas_call(
        _tagger_linear_kernel,
        out_shape=jax.ShapeDtypeStruct((batch, num_tags, l_pad), jnp.float32),
        grid_spec=pltpu.PrefetchScalarGridSpec(
            num_scalar_prefetch=0,
            grid=grid,
            in_specs=[
                # weight / bias: constant index_map -> fetched once, VMEM-resident
                pl.BlockSpec((num_tags, feat), lambda b, l: (0, 0)),
                pl.BlockSpec((num_tags, 1), lambda b, l: (0, 0)),
                # activations: one (feat, tile_l) NCL block per grid step
                pl.BlockSpec((1, feat, tile_l), lambda b, l: (b, 0, l)),
            ],
            out_specs=pl.BlockSpec((1, num_tags, tile_l), lambda b, l: (b, 0, l)),
        ),
        compiler_params=pltpu.CompilerParams(
            # independent tiles: lets v7x shard across its 2 TensorCores
            dimension_semantics=("parallel", "parallel")),
    )(w, b2d, x_in)

    # Small output-layout fixup (tensor is num_tags/feat the size of x), then
    # drop the length padding.  PyTorch also returns self.hidden (the layer's
    # params), which the caller already owns, so we return just `logit`.
    logit = jnp.transpose(out_ncl, (0, 2, 1))[:, :length, :]
    return logit


if __name__ == "__main__":
    key = jax.random.PRNGKey(0)
    k_x, k_w, k_b = jax.random.split(key, 3)

    batch, length, feat, num_tags = 2, 8, 32, 5

    # Synthetic nn.Linear(32, num_tags) parameters (kaiming-uniform-ish bound).
    bound = 1.0 / jnp.sqrt(jnp.float32(feat))
    weight = jax.random.uniform(k_w, (num_tags, feat), jnp.float32, -bound, bound)
    bias = jax.random.uniform(k_b, (num_tags,), jnp.float32, -bound, bound)

    # Channels-first activations as handed to the final transpose in forward.
    x_ncl = jax.random.normal(k_x, (batch, feat, length), jnp.float32)

    logit = tagger_forward(x_ncl, weight, bias)
    jax.block_until_ready(logit)

    # Correctness check vs plain-JAX reference of the PyTorch semantics.
    ref = jnp.einsum("bft,nf->btn", x_ncl, weight) + bias
    assert logit.shape == (batch, length, num_tags)
    assert jnp.allclose(logit, ref, atol=1e-5, rtol=1e-5)

    print("KERNEL_OK")
</pallas_src>

<mosaic_0001>
module attributes {stable_mosaic.version = 11 : i64} {
  func.func @_tagger_linear_kernel(%arg0: i32, %arg1: i32, %arg2: memref<5x32xf32, #tpu.memory_space<vmem>>, %arg3: memref<5x1xf32, #tpu.memory_space<vmem>>, %arg4: memref<1x32x128xf32, #tpu.memory_space<vmem>>, %arg5: memref<1x5x128xf32, #tpu.memory_space<vmem>>) attributes {dimension_semantics = [#tpu.dimension_semantics<parallel>, #tpu.dimension_semantics<parallel>], iteration_bounds = array<i64: 2, 1>, scalar_prefetch = 0 : i64, scratch_operands = 0 : i64, tpu.core_type = #tpu.core_type<tc>, window_params = [{pipeline_mode = #tpu.pipeline_mode<synchronous>, transform_indices = @transform_0, window_bounds = array<i64: 5, 32>}, {pipeline_mode = #tpu.pipeline_mode<synchronous>, transform_indices = @transform_1, window_bounds = array<i64: 5, 1>}, {transform_indices = @transform_2, window_bounds = array<i64: 1, 32, 128>}, {transform_indices = @transform_3, window_bounds = array<i64: 1, 5, 128>}]} {
    %c0 = arith.constant 0 : index
    %c0_0 = arith.constant 0 : index
    %0 = vector.load %arg2[%c0, %c0_0] : memref<5x32xf32, #tpu.memory_space<vmem>>, vector<5x32xf32>
    %c0_1 = arith.constant 0 : index
    %c0_2 = arith.constant 0 : index
    %c0_3 = arith.constant 0 : index
    %1 = vector.load %arg4[%c0_1, %c0_2, %c0_3] : memref<1x32x128xf32, #tpu.memory_space<vmem>>, vector<1x32x128xf32>
    %2 = vector.shape_cast %1 : vector<1x32x128xf32> to vector<32x128xf32>
    %cst = arith.constant dense<0.000000e+00> : vector<5x128xf32>
    %3 = tpu.matmul %0, %2, %cst {dimension_numbers = #tpu.dot_dimension_numbers<[1], [0], [0], [1], [0, 0, 1, 1], [], []>} : vector<5x32xf32>, vector<32x128xf32>, vector<5x128xf32> -> vector<5x128xf32>
    %c0_4 = arith.constant 0 : index
    %c0_5 = arith.constant 0 : index
    %4 = vector.load %arg3[%c0_4, %c0_5] : memref<5x1xf32, #tpu.memory_space<vmem>>, vector<5x1xf32>
    %5 = vector.broadcast %4 : vector<5x1xf32> to vector<5x128xf32>
    %6 = arith.addf %3, %5 : vector<5x128xf32>
    %c0_6 = arith.constant 0 : index
    %c0_7 = arith.constant 0 : index
    %c0_8 = arith.constant 0 : index
    %7 = vector.load %arg5[%c0_6, %c0_7, %c0_8] : memref<1x5x128xf32, #tpu.memory_space<vmem>>, vector<1x5x128xf32>
    %8 = vector.shape_cast %7 : vector<1x5x128xf32> to vector<5x128xf32>
    %9 = vector.shape_cast %6 : vector<5x128xf32> to vector<1x5x128xf32>
    tpu.vector_store %arg5[%c0_6, %c0_7, %c0_8], %9 {strides = array<i32>} : memref<1x5x128xf32, #tpu.memory_space<vmem>>, vector<1x5x128xf32>,
    return
  }
  func.func @transform_0(%arg0: i32, %arg1: i32) -> (i32, i32) {
    %c0_i32 = arith.constant 0 : i32
    %c0_i32_0 = arith.constant 0 : i32
    %c0_i32_1 = arith.constant 0 : i32
    return %c0_i32, %c0_i32_0 : i32, i32
  }
  func.func @transform_1(%arg0: i32, %arg1: i32) -> (i32, i32) {
    %c0_i32 = arith.constant 0 : i32
    %c0_i32_0 = arith.constant 0 : i32
    %c0_i32_1 = arith.constant 0 : i32
    return %c0_i32, %c0_i32_0 : i32, i32
  }
  func.func @transform_2(%arg0: i32, %arg1: i32) -> (i32, i32, i32) {
    %c0_i32 = arith.constant 0 : i32
    %c0_i32_0 = arith.constant 0 : i32
    return %arg0, %c0_i32, %arg1 : i32, i32, i32
  }
  func.func @transform_3(%arg0: i32, %arg1: i32) -> (i32, i32, i32) {
    %c0_i32 = arith.constant 0 : i32
    %c0_i32_0 = arith.constant 0 : i32
    return %arg0, %c0_i32, %arg1 : i32, i32, i32
  }
}

</mosaic_0001>

<llo_original>
// kernel: tpu_custom_call.1
$region0: #{tpu_custom_call.1}
  #allocation0 [shape = 'u32[]', space=smem, size = 0x4, offset = 0x4, fixed_abs, tag = 'smem constant byte address 0x4 - core index']
  #allocation1 [shape = 'u32[144,128]{1,0:T(1,128)}', space=vmem, size = 0x12000, scoped, tag = 'internal scratch']
  %s0 = inlined_call_operand.vmem [shape: f32[5,32], index: 0, kind: input, shape index: {}]
  %s1 = inlined_call_operand.vmem [shape: f32[5,1], index: 1, kind: input, shape index: {}]
  %s2 = inlined_call_operand.hbm [shape: f32[2,32,128], index: 2, kind: input, shape index: {}]
  %s3 = inlined_call_operand.vmem [shape: f32[2,5,128], index: 3, kind: output, shape index: {}]
  %s4 = sld [smem:[#allocation0]]
  $region49: #{tpu_custom_call.1} parent=0
    _
  %s6 = ssub.s32 1, %s4
  %s7 = scalar_select 0, %s6, %s4
  $region1: #{tpu_custom_call.1} parent=0
    #allocation2 [shape = 'u8[32768]{0}', space=vmem, size = 0x8000, scoped, tag = 'input window, operand 2']
    #allocation3 [shape = 's32[2]{0}', space=sflag, size = 0x8, scoped, tag = 'scoped memory for tpu_custom_call.1']
    %8 = vsyncpa [#allocation3], 0
    %s9 = scalar_lea.sflag [#allocation3], 1
    %10 = vsyncpa %s9, 0
    loop: start=0, step=1, limit=4
    $region2: #{tpu_custom_call.1} parent=1 // loop_pre_header
      _
    $region3: #{tpu_custom_call.1} parent=1 // loop_header
      %s12 = sphi 0, %s16
      %p13 = scmp.ge.s32.totalorder %s12, 4
      %s19 = sphi 0, %s31
      %s20 = sphi 0, %s27
      %s21 = sphi 0, %s19
      %s22 = sphi 0, %s20
      %s23 = sphi 0, %s21
      %s24 = sphi 0, %s22
      %s32 = sphi 0, %s32
      %s34 = sphi 0, %s32
      %s35 = sphi 0, %s34
      %s49 = sphi 0, %s35
      %s53 = sphi 0, %s53
      %s55 = sphi 0, %s53
      %s56 = sphi 0, %s55
      %s70 = sphi 0, %s56
      %s78 = sphi 0, %s80
      %s81 = sphi 0, %s78
      %s82 = sphi 0, %s81
      %s98 = sphi 0, %s82
      %s106 = sphi 0, %s108
      %s109 = sphi 0, %s106
      %s110 = sphi 0, %s109
      %s126 = sphi 0, %s110
    $region4: #{tpu_custom_call.1} parent=1 // loop_header_branch
      %15 = sbr.rel (%p13) target = $region8
    $region5: #{tpu_custom_call.1} parent=1 // loop_body
      %s17 = ssub.s32 %s12, 1
      %s18 = ssub.s32 %s12, 2
      %s25 = sadd.s32 1, %s20
      %p26 = scmp.ge.s32.totalorder %s25, 1
      %s27 = scalar_select %p26, 0, %s25
      %s28 = sadd.s32 1, %s19
      %s29 = scalar_select %p26, %s28, %s19
      %p30 = scmp.ge.s32.totalorder %s29, 2
      %s31 = scalar_select %p30, 0, %s29
      %s33 = sadd.s32 %s32, 1
      %p36 = scmp.eq.s32.totalorder %s12, 1
      %p37 = scmp.ne.s32.totalorder %s32, %s34
      %p38 = scmp.eq.s32.totalorder %s12, 0
      %p39 = por %p37, %p38
      %p40 = scmp.ne.s32.totalorder %s32, %s34
      %p41 = scmp.eq.s32.totalorder %s17, 1
      %p42 = por %p40, %p41
      %p43 = scmp.ne.s32.totalorder %s34, %s35
      %p44 = scmp.eq.s32.totalorder %s17, 0
      %p45 = por %p43, %p44
      %p46 = scmp.ne.s32.totalorder %s34, %s35
      %p47 = scmp.eq.s32.totalorder %s18, 1
      %p48 = por %p46, %p47
      %p50 = scmp.ne.s32.totalorder %s35, %s49
      %p51 = scmp.eq.s32.totalorder %s18, 0
      %p52 = por %p50, %p51
      %s54 = sadd.s32 %s53, 1
      %p57 = scmp.eq.s32.totalorder %s12, 1
      %p58 = scmp.ne.s32.totalorder %s53, %s55
      %p59 = scmp.eq.s32.totalorder %s12, 0
      %p60 = por %p58, %p59
      %p61 = scmp.ne.s32.totalorder %s53, %s55
      %p62 = scmp.eq.s32.totalorder %s17, 1
      %p63 = por %p61, %p62
      %p64 = scmp.ne.s32.totalorder %s55, %s56
      %p65 = scmp.eq.s32.totalorder %s17, 0
      %p66 = por %p64, %p65
      %p67 = scmp.ne.s32.totalorder %s55, %s56
      %p68 = scmp.eq.s32.totalorder %s18, 1
      %p69 = por %p67, %p68
      %p71 = scmp.ne.s32.totalorder %s56, %s70
      %p72 = scmp.eq.s32.totalorder %s18, 0
      %p73 = por %p71, %p72
      %s74 = ssub.s32 %s19, %s31
      %s75 = ssub.s32 %s20, %s27
      %s76 = sor.u32 %s74, %s75
      %p77 = scmp.eq.s32.totalorder %s76, 0
      %s79 = sadd.s32 %s78, 1
      %s80 = scalar_select %p77, %s78, %s79
      %p83 = pneg %p77
      %p84 = scmp.eq.s32.totalorder %s12, 1
      %p85 = por %p83, %p84
      %p86 = scmp.ne.s32.totalorder %s78, %s81
      %p87 = scmp.eq.s32.totalorder %s12, 0
      %p88 = por %p86, %p87
      %p89 = scmp.ne.s32.totalorder %s78, %s81
      %p90 = scmp.eq.s32.totalorder %s17, 1
      %p91 = por %p89, %p90
      %p92 = scmp.ne.s32.totalorder %s81, %s82
      %p93 = scmp.eq.s32.totalorder %s17, 0
      %p94 = por %p92, %p93
      %p95 = scmp.ne.s32.totalorder %s81, %s82
      %p96 = scmp.eq.s32.totalorder %s18, 1
      %p97 = por %p95, %p96
      %p99 = scmp.ne.s32.totalorder %s82, %s98
      %p100 = scmp.eq.s32.totalorder %s18, 0
      %p101 = por %p99, %p100
      %s102 = ssub.s32 %s19, %s31
      %s103 = ssub.s32 %s20, %s27
      %s104 = sor.u32 %s102, %s103
      %p105 = scmp.eq.s32.totalorder %s104, 0
      %s107 = sadd.s32 %s106, 1
      %s108 = scalar_select %p105, %s106, %s107
      %p111 = pneg %p105
      %p112 = scmp.eq.s32.totalorder %s12, 1
      %p113 = por %p111, %p112
      %p114 = scmp.ne.s32.totalorder %s106, %s109
      %p115 = scmp.eq.s32.totalorder %s12, 0
      %p116 = por %p114, %p115
      %p117 = scmp.ne.s32.totalorder %s106, %s109
      %p118 = scmp.eq.s32.totalorder %s17, 1
      %p119 = por %p117, %p118
      %p120 = scmp.ne.s32.totalorder %s109, %s110
      %p121 = scmp.eq.s32.totalorder %s17, 0
      %p122 = por %p120, %p121
      %p123 = scmp.ne.s32.totalorder %s109, %s110
      %p124 = scmp.eq.s32.totalorder %s18, 1
      %p125 = por %p123, %p124
      %p127 = scmp.ne.s32.totalorder %s110, %s126
      %p128 = scmp.eq.s32.totalorder %s18, 0
      %p129 = por %p127, %p128
      %p130 = scmp.le.s32.totalorder 1, %s12
      %p131 = scmp.lt.s32.totalorder %s12, 3
      %p132 = pnand %p130, %p131
      %p133 = pneg %p132
      // Predicated region
      $region9: #{tpu_custom_call.1} parent=5 // pred_check
        _
      $region10: #{tpu_custom_call.1} parent=5 // pred_check_branch
        %135 = sbr.rel (%p132) target = $region12
      $region11: #{tpu_custom_call.1} parent=5 // pred_region
        %s136 = ssub.s32 %s12, 1
        // Predicated region
        $region13: #{tpu_custom_call.1} parent=11 // pred_check
          %p137 = pneg %p45
        $region14: #{tpu_custom_call.1} parent=11 // pred_check_branch
          %139 = sbr.rel (%p137) target = $region16
        $region15: #{tpu_custom_call.1} parent=11 // pred_region
          _
        $region16: #{tpu_custom_call.1} parent=11 // pred_fallthru
          _
        // Predicated region
        $region17: #{tpu_custom_call.1} parent=11 // pred_check
          %p140 = pneg %p66
        $region18: #{tpu_custom_call.1} parent=11 // pred_check_branch
          %142 = sbr.rel (%p140) target = $region20
        $region19: #{tpu_custom_call.1} parent=11 // pred_region
          _
        $region20: #{tpu_custom_call.1} parent=11 // pred_fallthru
          _
      $region12: #{tpu_custom_call.1} parent=5 // pred_fallthru
        _
      %p143 = scmp.lt.s32.totalorder %s12, 2
      // Predicated region
      $region21: #{tpu_custom_call.1} parent=5 // pred_check
        %p144 = pneg %p143
      $region22: #{tpu_custom_call.1} parent=5 // pred_check_branch
        %146 = sbr.rel (%p144) target = $region24
      $region23: #{tpu_custom_call.1} parent=5 // pred_region
        // Predicated region
        $region25: #{tpu_custom_call.1} parent=23 // pred_check
          %p147 = pneg %p88
        $region26: #{tpu_custom_call.1} parent=23 // pred_check_branch
          %149 = sbr.rel (%p147) target = $region28
        $region27: #{tpu_custom_call.1} parent=23 // pred_region
          %s150 = sand.u32 %s78, 1
          %s151 = scalar_lea.sflag [#allocation3], %s150
          %s152 = sand.u32 %s78, 1
          %s153 = smul.addr %s152, 32
          %s154 = scalar_lea.vmem [#allocation2], %s153
          %s156 = ssub.s32 512, 512
          %157 = vsyncadd %s151, %s156
          %s158 = smul.addr %s19, 4
          %s159 = sadd.s32 %s20, %s158
          %s160 = smul.addr %s159, 128
          %s161 = scalar_lea.hbm %s2, %s160
          %s162 = sshll.u32 %s154, 4
          %s163 = int_to_ptr.vmem [resolvable:$true] %s162
          %168 = dma.hbm_to_vmem [thread:$0]  %s161, 512, %s163, %s151, 128, 128, 8
        $region28: #{tpu_custom_call.1} parent=23 // pred_fallthru
          _
      $region24: #{tpu_custom_call.1} parent=5 // pred_fallthru
        _
      %p169 = scmp.le.s32.totalorder 1, %s12
      %p170 = scmp.lt.s32.totalorder %s12, 3
      %p171 = pnand %p169, %p170
      %p172 = pneg %p171
      // Predicated region
      $region29: #{tpu_custom_call.1} parent=5 // pred_check
        _
      $region30: #{tpu_custom_call.1} parent=5 // pred_check_branch
        %174 = sbr.rel (%p171) target = $region32
      $region31: #{tpu_custom_call.1} parent=5 // pred_region
        %s175 = ssub.s32 %s12, 1
        %s176 = sand.u32 %s81, 1
        %s177 = scalar_lea.sflag [#allocation3], %s176
        %s178 = sand.u32 %s81, 1
        %s179 = smul.addr %s178, 32
        %s180 = scalar_lea.vmem [#allocation2], %s179
        // Predicated region
        $region33: #{tpu_custom_call.1} parent=31 // pred_check
          %p181 = pneg %p94
        $region34: #{tpu_custom_call.1} parent=31 // pred_check_branch
          %183 = sbr.rel (%p181) target = $region36
        $region35: #{tpu_custom_call.1} parent=31 // pred_region
          %184 = dma.done %s177, 512
        $region36: #{tpu_custom_call.1} parent=31 // pred_fallthru
          _
        %p185 = pneg %p45
        %p186 = pneg %p42
        %p187 = pneg %p66
        %p188 = pneg %p63
        %s189 = sand.u32 %s81, 1
        %s190 = scalar_lea.sflag [#allocation3], %s189
        %s191 = sand.u32 %s81, 1
        %s192 = smul.addr %s191, 32
        %s193 = scalar_lea.vmem [#allocation2], %s192
        %p194 = pneg %p94
        %p195 = pneg %p91
        %p196 = pneg %p122
        %p197 = pneg %p119
        %p198 = scmp.lt.s32.totalorder %s21, 1
        %s199 = scalar_select %p198, %s21, 1
        %p200 = scmp.lt.s32.totalorder %s22, 0
        %s201 = scalar_select %p200, %s22, 0
        %s202 = sadd.s32 %s201, %s199
        %s203 = smul.addr %s202, 8
        %s204 = scalar_lea.vmem %s3, %s203
        %p205 = scmp.lt.s32.totalorder %s21, 1
        %s206 = scalar_select %p205, %s21, 1
        %p207 = scmp.lt.s32.totalorder %s22, 0
        %s208 = scalar_select %p207, %s22, 0
        %s209 = sadd.s32 %s208, %s206
        %s210 = smul.addr %s209, 8
        %s211 = scalar_lea.vmem %s3, %s210
        %v212 = vld [vmem:[%s0] sm:$0x1f]
        %v213 = vld [vmem:[%s180] sm:$0xff]
        %v214 = vld [vmem:[%s180 + $0x8] sm:$0xff]
        %v215 = vld [vmem:[%s180 + $0x10] sm:$0xff]
        %v216 = vld [vmem:[%s180 + $0x18] sm:$0xff]
        %v217 = vld [vmem:[%s1] sm:$0x1f]
        %219 = vset.pattern.permute.xlu0 0
        %220 = vperm.xlu0 %219, %v217
        %v221 = vpop.permute.xlu0 %220
        %vm223 = vcmask 261120
        %v225 = vsel %vm223, %v212, 0
        %227 = vmatprep.subr.mxu0 0.0
        %228 = vmatpush1.msra.mxu0 0.0
        %229 = vmatprep.subr.mxu0 0.0
        %230 = vmatpush1.msra.mxu0 0.0
        %231 = vmatprep.subr.mxu0 0.0
        %232 = vmatpush1.msra.mxu0 0.0
        %233 = vmatprep.subr.mxu0 0.0
        %234 = vmatpush1.msra.mxu0 0.0
        %235 = vmatprep.subr.mxu0 0.0
        %236 = vmatpush1.msra.mxu0 0.0
        %237 = vmatprep.subr.mxu0 0.0
        %238 = vmatpush1.msra.mxu0 0.0
        %239 = vmatprep.subr.mxu0 0.0
        %240 = vmatpush1.msra.mxu0 0.0
        %241 = vmatprep.subr.mxu0 0.0
        %242 = vmatpush1.msra.mxu0 0.0
        %243 = vmatprep.subr.mxu0 0.0
        %244 = vmatpush1.msra.mxu0 0.0
        %245 = vmatprep.subr.mxu0 0.0
        %246 = vmatpush1.msra.mxu0 0.0
        %247 = vmatprep.subr.mxu0 0.0
        %248 = vmatpush1.msra.mxu0 0.0
        %249 = vmatprep.subr.mxu0 0.0
        %250 = vmatpush1.msra.mxu0 0.0
        %251 = vmatprep.subr.mxu0 0.0
        %252 = vmatpush1.msra.mxu0 %v216
        %253 = vmatprep.subr.mxu0 0.0
        %254 = vmatpush1.msra.mxu0 %v215
        %255 = vmatprep.subr.mxu0 0.0
        %256 = vmatpush1.msra.mxu0 %v214
        %257 = vmatprep.subr.mxu0 0.0
        %258 = vmatpush1.msra.mxu0 %v213
        %259 = vmatprep.subr.mxu0 0.0
        %260 = vmatpush2.msra.mxu0 0.0
        %261 = vmatprep.subr.mxu0 0.0
        %262 = vmatpush2.msra.mxu0 0.0
        %263 = vmatprep.subr.mxu0 0.0
        %264 = vmatpush2.msra.mxu0 0.0
        %265 = vmatprep.subr.mxu0 0.0
        %266 = vmatpush2.msra.mxu0 0.0
        %267 = vmatprep.subr.mxu0 0.0
        %268 = vmatpush2.msra.mxu0 0.0
        %269 = vmatprep.subr.mxu0 0.0
        %270 = vmatpush2.msra.mxu0 0.0
        %271 = vmatprep.subr.mxu0 0.0
        %272 = vmatpush2.msra.mxu0 0.0
        %273 = vmatprep.subr.mxu0 0.0
        %274 = vmatpush2.msra.mxu0 0.0
        %275 = vmatprep.subr.mxu0 0.0
        %276 = vmatpush2.msra.mxu0 0.0
        %277 = vmatprep.subr.mxu0 0.0
        %278 = vmatpush2.msra.mxu0 0.0
        %279 = vmatprep.subr.mxu0 0.0
        %280 = vmatpush2.msra.mxu0 0.0
        %281 = vmatprep.subr.mxu0 0.0
        %282 = vmatpush2.msra.mxu0 0.0
        %283 = vmatprep.subr.mxu0 0.0
        %284 = vmatpush2.msra.mxu0 0.0
        %285 = vmatprep.subr.mxu0 0.0
        %286 = vmatpush2.msra.mxu0 0.0
        %287 = vmatprep.subr.mxu0 0.0
        %288 = vmatpush2.msra.mxu0 0.0
        %289 = vmatprep.subr.mxu0 0.0
        %290 = vmatpush2.msra.mxu0 0.0
        %291 = vmatprep.mubr.f32.mxu0 0.0
        %292 = vmatmul.mubr.f32.gmra.mxu0 %v225
        %v293 = vpop.f32.mrf.mxu0
        %v294 = vadd.f32 %v221, %v293
        %v295 = vpop.f32.mrf.mxu0
        %296 = vdwg.mxu0
        %297 = vst [vmem:[%s211] sm:$0x1f] %v294
        %p298 = scmp.lt.s32.totalorder %s21, 1
        %s299 = scalar_select %p298, %s21, 1
        %p300 = scmp.lt.s32.totalorder %s22, 0
        %s301 = scalar_select %p300, %s22, 0
        %s302 = sadd.s32 %s301, %s299
        %s303 = smul.addr %s302, 8
        %s304 = scalar_lea.vmem %s3, %s303
        // Predicated region
        $region37: #{tpu_custom_call.1} parent=31 // pred_check
          %p305 = pneg %p119
        $region38: #{tpu_custom_call.1} parent=31 // pred_check_branch
          %307 = sbr.rel (%p305) target = $region40
        $region39: #{tpu_custom_call.1} parent=31 // pred_region
          _
        $region40: #{tpu_custom_call.1} parent=31 // pred_fallthru
          _
      $region32: #{tpu_custom_call.1} parent=5 // pred_fallthru
        _
      %p308 = scmp.le.s32.totalorder 2, %s12
      // Predicated region
      $region41: #{tpu_custom_call.1} parent=5 // pred_check
        %p309 = pneg %p308
      $region42: #{tpu_custom_call.1} parent=5 // pred_check_branch
        %311 = sbr.rel (%p309) target = $region44
      $region43: #{tpu_custom_call.1} parent=5 // pred_region
        %s312 = ssub.s32 %s12, 2
        // Predicated region
        $region45: #{tpu_custom_call.1} parent=43 // pred_check
          %p313 = pneg %p125
        $region46: #{tpu_custom_call.1} parent=43 // pred_check_branch
          %315 = sbr.rel (%p313) target = $region48
        $region47: #{tpu_custom_call.1} parent=43 // pred_region
          %p316 = scmp.lt.s32.totalorder %s23, 1
          %s317 = scalar_select %p316, %s23, 1
          %p318 = scmp.lt.s32.totalorder %s24, 0
          %s319 = scalar_select %p318, %s24, 0
          %s320 = sadd.s32 %s319, %s317
          %s321 = smul.addr %s320, 8
          %s322 = scalar_lea.vmem %s3, %s321
        $region48: #{tpu_custom_call.1} parent=43 // pred_fallthru
          _
      $region44: #{tpu_custom_call.1} parent=5 // pred_fallthru
        _
    $region6: #{tpu_custom_call.1} parent=1 // loop_footer
      %s16 = sadd.s32 1, %s12
    $region7: #{tpu_custom_call.1} parent=1 // loop_footer_branch
      %11 = sbr.rel target = $region3
    $region8: #{tpu_custom_call.1} parent=1 // loop_exit
      _
    %323 = vsyncpa [#allocation3], 1
    %s324 = scalar_lea.sflag [#allocation3], 1
    %325 = vsyncpa %s324, 1

</llo_original>
